<compile_context>
chip_gen: v5e
topology: v5e:2x2
jax: 0.10.0
libtpu: 0.0.40
codegen_flags: <defaults>
</compile_context>

<pallas_src>
import jax
import jax.numpy as jnp
from jax.experimental import pallas as pl
from jax.experimental.pallas import tpu as pltpu

K = 3  # kernel_size of both convs (nn.Conv2d(..., kernel_size=3))


def _banded_weight(w_hwio, w_in, w_out):
    """Pack (K, K, Ci, Co) HWIO conv weights into K block-Toeplitz matrices.

    Returns (K, w_in*Ci, w_out*Co) with
        band[kh, w*Ci + ci, wo*Co + co] = w_hwio[kh, w - wo, ci, co]
    when 0 <= w - wo < K (else 0), so that for one vertical tap kh
        out_rows = in_rows @ band[kh]
    computes the full horizontal (kw, ci) contraction of a VALID conv.
    """
    k, _, ci, co = w_hwio.shape
    w_idx = jnp.arange(w_in)[:, None]
    wo_idx = jnp.arange(w_out)[None, :]
    kw = w_idx - wo_idx                                   # (w_in, w_out)
    valid = (kw >= 0) & (kw < k)
    kw_c = jnp.clip(kw, 0, k - 1)
    gathered = w_hwio[:, kw_c, :, :]                      # (K, w_in, w_out, Ci, Co)
    band = jnp.where(valid[None, :, :, None, None], gathered, 0.0)
    band = jnp.transpose(band, (0, 1, 3, 2, 4))           # (K, w_in, Ci, w_out, Co)
    return band.reshape(k, w_in * ci, w_out * co)


def _block_kernel(x_ref, w1_ref, b1_ref, w2_ref, b2_ref, o_ref):
    # x_ref : (Bt*H, W*Cin)          batch-tile row slab; (w, ci) on lanes
    # w1_ref: (K, W*Cin, Wo*Cmid)    banded conv1 weights
    # b1_ref: (1, Wo*Cmid)           conv1 bias pre-tiled over Wo
    # w2_ref: (K, Wo*Cmid, Lout)     banded conv2 weights, lane-padded to 128k
    # b2_ref: (1, Lout)              conv2 bias, lane-padded
    # o_ref : (Bt*H, Lout)           lane-dense output slab
    rows = x_ref.shape[0]
    m1 = rows - (K - 1)   # conv1 slab rows (image-seam rows are garbage, discarded)
    m2 = m1 - (K - 1)     # conv2 slab rows

    bias1 = b1_ref[...]
    bias2 = b2_ref[...]

    # ---- conv1: K banded matmuls over the whole batch-tile slab, f32 accum ----
    acc1 = jnp.dot(x_ref[0:m1, :], w1_ref[0], preferred_element_type=jnp.float32)
    for kh in range(1, K):
        acc1 = acc1 + jnp.dot(x_ref[kh:kh + m1, :], w1_ref[kh],
                              preferred_element_type=jnp.float32)
    h1 = jnp.maximum(acc1 + bias1, 0.0)                   # (m1, Wo*Cmid)

    # ---- conv2: same structure on conv1's slab ----
    acc2 = jnp.dot(h1[0:m2, :], w2_ref[0], preferred_element_type=jnp.float32)
    for kh in range(1, K):
        acc2 = acc2 + jnp.dot(h1[kh:kh + m2, :], w2_ref[kh],
                              preferred_element_type=jnp.float32)

    # One lane-dense (128-wide) store for the whole tile; zero the few
    # tail rows so the output block is fully defined.
    o_ref[0:m2, :] = (acc2 + bias2).astype(o_ref.dtype)
    o_ref[m2:rows, :] = jnp.zeros((rows - m2, o_ref.shape[1]), o_ref.dtype)


def _is_multi_core_tpu():
    """True only for dual-TensorCore parts (v7x); single TC otherwise."""
    try:
        kind = (getattr(jax.devices()[0], "device_kind", "") or "").lower()
        return "v7" in kind
    except Exception:
        return False


def _pick_batch_tile(n, h, lane_in, lane_mid, lane_out, itemsize=4,
                     budget_bytes=24 << 20, multi_core=False):
    """Largest divisor of n whose per-step footprint (including the
    double-buffered weight bands) fits a conservative VMEM budget.
    Single-TC parts prefer the largest tile (fewest grid steps); v7x prefers
    keeping >= 2 'parallel' steps so both TensorCores get work."""
    # grid-invariant buffers (weights + biases), double-buffered by pipelining
    fixed = 2 * itemsize * (K * lane_in * lane_mid + lane_mid
                            + K * lane_mid * lane_out + lane_out)
    # per-image: input + output blocks (double-buffered) + live intermediates
    per_image = itemsize * h * (4 * lane_in + 4 * lane_out
                                + 2 * lane_mid + lane_out)
    divs = [d for d in range(1, n + 1) if n % d == 0]
    # sublane-tiling constraint: block row count must be a multiple of 8
    # unless the block covers the whole array (single grid step).
    divs = [d for d in divs if (d * h) % 8 == 0 or d == n]
    fitting = [d for d in divs if fixed + d * per_image <= budget_bytes]
    if not fitting:
        return n if not divs else min(divs)
    if multi_core:
        multi_step = [d for d in fitting if n // d >= 2]
        if multi_step:
            return max(multi_step)
    return max(fitting)


def block_forward(x_nchw, w1_oihw, b1, w2_oihw, b2):
    """Pallas version of Block.forward. Input/output are NCHW like PyTorch."""
    n, cin, h, w = x_nchw.shape
    cmid = w1_oihw.shape[0]
    cout = w2_oihw.shape[0]
    ho, wo = h - (K - 1), w - (K - 1)       # conv1 output spatial dims
    h2, w2 = ho - (K - 1), wo - (K - 1)     # conv2 output spatial dims

    lane_in = w * cin
    lane_mid = wo * cmid
    lane_out_raw = w2 * cout
    lane_out = max(128, ((lane_out_raw + 127) // 128) * 128)  # pad for unmasked vst

    # ---- layout glue / weight packing in plain XLA (outside the kernel) ----
    x2d = jnp.transpose(x_nchw, (0, 2, 3, 1)).reshape(n * h, lane_in)
    w1_band = _banded_weight(jnp.transpose(w1_oihw, (2, 3, 1, 0)), w, wo)
    w2_band = _banded_weight(jnp.transpose(w2_oihw, (2, 3, 1, 0)), wo, w2)
    b1_t = jnp.tile(b1, wo).reshape(1, lane_mid)
    b2_t = jnp.tile(b2, w2).reshape(1, lane_out_raw)
    pad = lane_out - lane_out_raw
    if pad:
        w2_band = jnp.pad(w2_band, ((0, 0), (0, 0), (0, pad)))
        b2_t = jnp.pad(b2_t, ((0, 0), (0, pad)))

    multi_core = _is_multi_core_tpu()
    bt = _pick_batch_tile(n, h, lane_in, lane_mid, lane_out,
                          itemsize=x2d.dtype.itemsize, multi_core=multi_core)

    out2d = pl.pallas_call(
        _block_kernel,
        out_shape=jax.ShapeDtypeStruct((n * h, lane_out), x2d.dtype),
        grid_spec=pltpu.PrefetchScalarGridSpec(
            num_scalar_prefetch=0,
            grid=(n // bt,),
            in_specs=[
                pl.BlockSpec((bt * h, lane_in), lambda i: (i, 0)),
                pl.BlockSpec((K, lane_in, lane_mid), lambda i: (0, 0, 0)),
                pl.BlockSpec((1, lane_mid), lambda i: (0, 0)),
                pl.BlockSpec((K, lane_mid, lane_out), lambda i: (0, 0, 0)),
                pl.BlockSpec((1, lane_out), lambda i: (0, 0)),
            ],
            out_specs=pl.BlockSpec((bt * h, lane_out), lambda i: (i, 0)),
        ),
        compiler_params=pltpu.CompilerParams(
            dimension_semantics=("parallel",),
            vmem_limit_bytes=32 << 20),
    )(x2d, w1_band, b1_t, w2_band, b2_t)

    # Per image g: valid conv2 rows live at slab rows [g*H, g*H + H2).
    out = out2d.reshape(n, h, lane_out)[:, :h2, :lane_out_raw]
    out = out.reshape(n, h2, w2, cout)
    return jnp.transpose(out, (0, 3, 1, 2))   # back to NCHW


def _reference_forward(x, w1, b1, w2, b2):
    """Pure-JAX reference matching PyTorch semantics (NCHW / OIHW, VALID)."""
    y = jax.lax.conv_general_dilated(
        x, w1, (1, 1), "VALID",
        dimension_numbers=("NCHW", "OIHW", "NCHW")) + b1[None, :, None, None]
    y = jnp.maximum(y, 0.0)
    y = jax.lax.conv_general_dilated(
        y, w2, (1, 1), "VALID",
        dimension_numbers=("NCHW", "OIHW", "NCHW")) + b2[None, :, None, None]
    return y


if __name__ == "__main__":
    # Block(inChannels=4, outChannels=8) on a (2, 4, 16, 16) NCHW input.
    N, Cin, H, W = 2, 4, 16, 16
    Cout = 8

    key = jax.random.PRNGKey(0)
    kx, kw1, kb1, kw2, kb2 = jax.random.split(key, 5)

    x = jax.random.normal(kx, (N, Cin, H, W), dtype=jnp.float32)
    # Deterministic synthetic parameters (PyTorch shapes: OIHW weights, 1-D bias).
    w1 = 0.1 * jax.random.normal(kw1, (Cout, Cin, K, K), dtype=jnp.float32)
    b1 = 0.1 * jax.random.normal(kb1, (Cout,), dtype=jnp.float32)
    w2 = 0.1 * jax.random.normal(kw2, (Cout, Cout, K, K), dtype=jnp.float32)
    b2 = 0.1 * jax.random.normal(kb2, (Cout,), dtype=jnp.float32)

    out = jax.block_until_ready(block_forward(x, w1, b1, w2, b2))

    ref = _reference_forward(x, w1, b1, w2, b2)
    assert out.shape == (N, Cout, H - 4, W - 4), out.shape
    if not jnp.allclose(out, ref, atol=1e-4, rtol=1e-4):
        raise AssertionError("Pallas Block output does not match reference")

    print("KERNEL_OK")
</pallas_src>

<mosaic_0001>
module attributes {stable_mosaic.version = 11 : i64} {
  func.func @_block_kernel(%arg0: i32, %arg1: memref<32x64xf32, #tpu.memory_space<vmem>>, %arg2: memref<3x64x112xf32, #tpu.memory_space<vmem>>, %arg3: memref<1x112xf32, #tpu.memory_space<vmem>>, %arg4: memref<3x112x128xf32, #tpu.memory_space<vmem>>, %arg5: memref<1x128xf32, #tpu.memory_space<vmem>>, %arg6: memref<32x128xf32, #tpu.memory_space<vmem>>) attributes {dimension_semantics = [#tpu.dimension_semantics<parallel>], iteration_bounds = array<i64: 1>, scalar_prefetch = 0 : i64, scratch_operands = 0 : i64, tpu.core_type = #tpu.core_type<tc>, window_params = [{transform_indices = @transform_0, window_bounds = array<i64: 32, 64>}, {pipeline_mode = #tpu.pipeline_mode<synchronous>, transform_indices = @transform_1, window_bounds = array<i64: 3, 64, 112>}, {pipeline_mode = #tpu.pipeline_mode<synchronous>, transform_indices = @transform_2, window_bounds = array<i64: 1, 112>}, {pipeline_mode = #tpu.pipeline_mode<synchronous>, transform_indices = @transform_3, window_bounds = array<i64: 3, 112, 128>}, {pipeline_mode = #tpu.pipeline_mode<synchronous>, transform_indices = @transform_4, window_bounds = array<i64: 1, 128>}, {transform_indices = @transform_5, window_bounds = array<i64: 32, 128>}]} {
    %c0 = arith.constant 0 : index
    %c0_0 = arith.constant 0 : index
    %0 = vector.load %arg3[%c0, %c0_0] : memref<1x112xf32, #tpu.memory_space<vmem>>, vector<1x112xf32>
    %c0_1 = arith.constant 0 : index
    %c0_2 = arith.constant 0 : index
    %1 = vector.load %arg5[%c0_1, %c0_2] : memref<1x128xf32, #tpu.memory_space<vmem>>, vector<1x128xf32>
    %c0_3 = arith.constant 0 : index
    %c0_4 = arith.constant 0 : index
    %2 = vector.load %arg1[%c0_3, %c0_4] : memref<32x64xf32, #tpu.memory_space<vmem>>, vector<30x64xf32>
    %c0_5 = arith.constant 0 : index
    %c0_6 = arith.constant 0 : index
    %c0_7 = arith.constant 0 : index
    %3 = vector.load %arg2[%c0_5, %c0_6, %c0_7] : memref<3x64x112xf32, #tpu.memory_space<vmem>>, vector<1x64x112xf32>
    %4 = vector.shape_cast %3 : vector<1x64x112xf32> to vector<64x112xf32>
    %cst = arith.constant dense<0.000000e+00> : vector<30x112xf32>
    %5 = tpu.matmul %2, %4, %cst {dimension_numbers = #tpu.dot_dimension_numbers<[1], [0], [0], [1], [0, 0, 1, 1], [], []>} : vector<30x64xf32>, vector<64x112xf32>, vector<30x112xf32> -> vector<30x112xf32>
    %c1 = arith.constant 1 : index
    %c0_8 = arith.constant 0 : index
    %6 = vector.load %arg1[%c1, %c0_8] : memref<32x64xf32, #tpu.memory_space<vmem>>, vector<30x64xf32>
    %c1_9 = arith.constant 1 : index
    %c0_10 = arith.constant 0 : index
    %c0_11 = arith.constant 0 : index
    %7 = vector.load %arg2[%c1_9, %c0_10, %c0_11] : memref<3x64x112xf32, #tpu.memory_space<vmem>>, vector<1x64x112xf32>
    %8 = vector.shape_cast %7 : vector<1x64x112xf32> to vector<64x112xf32>
    %cst_12 = arith.constant dense<0.000000e+00> : vector<30x112xf32>
    %9 = tpu.matmul %6, %8, %cst_12 {dimension_numbers = #tpu.dot_dimension_numbers<[1], [0], [0], [1], [0, 0, 1, 1], [], []>} : vector<30x64xf32>, vector<64x112xf32>, vector<30x112xf32> -> vector<30x112xf32>
    %10 = arith.addf %5, %9 : vector<30x112xf32>
    %c2 = arith.constant 2 : index
    %c0_13 = arith.constant 0 : index
    %11 = vector.load %arg1[%c2, %c0_13] : memref<32x64xf32, #tpu.memory_space<vmem>>, vector<30x64xf32>
    %c2_14 = arith.constant 2 : index
    %c0_15 = arith.constant 0 : index
    %c0_16 = arith.constant 0 : index
    %12 = vector.load %arg2[%c2_14, %c0_15, %c0_16] : memref<3x64x112xf32, #tpu.memory_space<vmem>>, vector<1x64x112xf32>
    %13 = vector.shape_cast %12 : vector<1x64x112xf32> to vector<64x112xf32>
    %cst_17 = arith.constant dense<0.000000e+00> : vector<30x112xf32>
    %14 = tpu.matmul %11, %13, %cst_17 {dimension_numbers = #tpu.dot_dimension_numbers<[1], [0], [0], [1], [0, 0, 1, 1], [], []>} : vector<30x64xf32>, vector<64x112xf32>, vector<30x112xf32> -> vector<30x112xf32>
    %15 = arith.addf %10, %14 : vector<30x112xf32>
    %16 = vector.broadcast %0 : vector<1x112xf32> to vector<30x112xf32>
    %17 = arith.addf %15, %16 : vector<30x112xf32>
    %cst_18 = arith.constant 0.000000e+00 : f32
    %18 = vector.broadcast %cst_18 : f32 to vector<30x112xf32>
    %19 = arith.maximumf %17, %18 : vector<30x112xf32>
    %20 = vector.extract_strided_slice %19 {offsets = [0, 0], sizes = [28, 112], strides = [1, 1]} : vector<30x112xf32> to vector<28x112xf32>
    %c0_19 = arith.constant 0 : index
    %c0_20 = arith.constant 0 : index
    %c0_21 = arith.constant 0 : index
    %21 = vector.load %arg4[%c0_19, %c0_20, %c0_21] : memref<3x112x128xf32, #tpu.memory_space<vmem>>, vector<1x112x128xf32>
    %22 = vector.shape_cast %21 : vector<1x112x128xf32> to vector<112x128xf32>
    %cst_22 = arith.constant dense<0.000000e+00> : vector<28x128xf32>
    %23 = tpu.matmul %20, %22, %cst_22 {dimension_numbers = #tpu.dot_dimension_numbers<[1], [0], [0], [1], [0, 0, 1, 1], [], []>} : vector<28x112xf32>, vector<112x128xf32>, vector<28x128xf32> -> vector<28x128xf32>
    %24 = vector.extract_strided_slice %19 {offsets = [1, 0], sizes = [28, 112], strides = [1, 1]} : vector<30x112xf32> to vector<28x112xf32>
    %c1_23 = arith.constant 1 : index
    %c0_24 = arith.constant 0 : index
    %c0_25 = arith.constant 0 : index
    %25 = vector.load %arg4[%c1_23, %c0_24, %c0_25] : memref<3x112x128xf32, #tpu.memory_space<vmem>>, vector<1x112x128xf32>
    %26 = vector.shape_cast %25 : vector<1x112x128xf32> to vector<112x128xf32>
    %cst_26 = arith.constant dense<0.000000e+00> : vector<28x128xf32>
    %27 = tpu.matmul %24, %26, %cst_26 {dimension_numbers = #tpu.dot_dimension_numbers<[1], [0], [0], [1], [0, 0, 1, 1], [], []>} : vector<28x112xf32>, vector<112x128xf32>, vector<28x128xf32> -> vector<28x128xf32>
    %28 = arith.addf %23, %27 : vector<28x128xf32>
    %29 = vector.extract_strided_slice %19 {offsets = [2, 0], sizes = [28, 112], strides = [1, 1]} : vector<30x112xf32> to vector<28x112xf32>
    %c2_27 = arith.constant 2 : index
    %c0_28 = arith.constant 0 : index
    %c0_29 = arith.constant 0 : index
    %30 = vector.load %arg4[%c2_27, %c0_28, %c0_29] : memref<3x112x128xf32, #tpu.memory_space<vmem>>, vector<1x112x128xf32>
    %31 = vector.shape_cast %30 : vector<1x112x128xf32> to vector<112x128xf32>
    %cst_30 = arith.constant dense<0.000000e+00> : vector<28x128xf32>
    %32 = tpu.matmul %29, %31, %cst_30 {dimension_numbers = #tpu.dot_dimension_numbers<[1], [0], [0], [1], [0, 0, 1, 1], [], []>} : vector<28x112xf32>, vector<112x128xf32>, vector<28x128xf32> -> vector<28x128xf32>
    %33 = arith.addf %28, %32 : vector<28x128xf32>
    %34 = vector.broadcast %1 : vector<1x128xf32> to vector<28x128xf32>
    %35 = arith.addf %33, %34 : vector<28x128xf32>
    %c0_31 = arith.constant 0 : index
    %c0_32 = arith.constant 0 : index
    %36 = vector.load %arg6[%c0_31, %c0_32] : memref<32x128xf32, #tpu.memory_space<vmem>>, vector<28x128xf32>
    tpu.vector_store %arg6[%c0_31, %c0_32], %35 {strides = array<i32>} : memref<32x128xf32, #tpu.memory_space<vmem>>, vector<28x128xf32>,
    %cst_33 = arith.constant 0.000000e+00 : f32
    %37 = vector.broadcast %cst_33 : f32 to vector<4x128xf32>
    %c28 = arith.constant 28 : index
    %c0_34 = arith.constant 0 : index
    %38 = vector.load %arg6[%c28, %c0_34] : memref<32x128xf32, #tpu.memory_space<vmem>>, vector<4x128xf32>
    tpu.vector_store %arg6[%c28, %c0_34], %37 {strides = array<i32>} : memref<32x128xf32, #tpu.memory_space<vmem>>, vector<4x128xf32>,
    return
  }
  func.func @transform_0(%arg0: i32) -> (i32, i32) {
    %c0_i32 = arith.constant 0 : i32
    %c0_i32_0 = arith.constant 0 : i32
    return %arg0, %c0_i32 : i32, i32
  }
  func.func @transform_1(%arg0: i32) -> (i32, i32, i32) {
    %c0_i32 = arith.constant 0 : i32
    %c0_i32_0 = arith.constant 0 : i32
    %c0_i32_1 = arith.constant 0 : i32
    %c0_i32_2 = arith.constant 0 : i32
    return %c0_i32, %c0_i32_0, %c0_i32_1 : i32, i32, i32
  }
  func.func @transform_2(%arg0: i32) -> (i32, i32) {
    %c0_i32 = arith.constant 0 : i32
    %c0_i32_0 = arith.constant 0 : i32
    %c0_i32_1 = arith.constant 0 : i32
    return %c0_i32, %c0_i32_0 : i32, i32
  }
  func.func @transform_3(%arg0: i32) -> (i32, i32, i32) {
    %c0_i32 = arith.constant 0 : i32
    %c0_i32_0 = arith.constant 0 : i32
    %c0_i32_1 = arith.constant 0 : i32
    %c0_i32_2 = arith.constant 0 : i32
    return %c0_i32, %c0_i32_0, %c0_i32_1 : i32, i32, i32
  }
  func.func @transform_4(%arg0: i32) -> (i32, i32) {
    %c0_i32 = arith.constant 0 : i32
    %c0_i32_0 = arith.constant 0 : i32
    %c0_i32_1 = arith.constant 0 : i32
    return %c0_i32, %c0_i32_0 : i32, i32
  }
  func.func @transform_5(%arg0: i32) -> (i32, i32) {
    %c0_i32 = arith.constant 0 : i32
    %c0_i32_0 = arith.constant 0 : i32
    return %arg0, %c0_i32 : i32, i32
  }
}

</mosaic_0001>

<llo_original>
// kernel: tpu_custom_call.1
$region0: #{tpu_custom_call.1}
  #allocation0 [shape = 'u32[]', space=smem, size = 0x4, offset = 0x4, fixed_abs, tag = 'smem constant byte address 0x4 - core index']
  #allocation1 [shape = 'u32[72,128]{1,0:T(1,128)}', space=vmem, size = 0x9000, scoped, tag = 'internal scratch']
  %s0 = inlined_call_operand.hbm [shape: f32[32,64], index: 0, kind: input, shape index: {}]
  %s1 = inlined_call_operand.hbm [shape: f32[3,64,112], index: 1, kind: input, shape index: {}]
  %s2 = inlined_call_operand.vmem [shape: f32[1,112], index: 2, kind: input, shape index: {}]
  %s3 = inlined_call_operand.hbm [shape: f32[3,112,128], index: 3, kind: input, shape index: {}]
  %s4 = inlined_call_operand.vmem [shape: f32[1,128], index: 4, kind: input, shape index: {}]
  %s5 = inlined_call_operand.hbm [shape: f32[32,128], index: 5, kind: output, shape index: {}]
  %s6 = sld [smem:[#allocation0]]
  $region42: #{tpu_custom_call.1} parent=0
    _
  %s8 = ssub.s32 1, %s6
  %s9 = scalar_select 0, %s8, %s6
  $region1: #{tpu_custom_call.1} parent=0
    #allocation2 [shape = 'u8[16384]{0}', space=vmem, size = 0x4000, scoped, tag = 'input window, operand 0, single buffered']
    #allocation3 [shape = 's32[1]{0}', space=sflag, size = 0x4, scoped, tag = 'scoped memory for tpu_custom_call.1']
    #allocation4 [shape = 's32[1]{0}', space=sflag, size = 0x4, scoped, tag = 'scoped memory for tpu_custom_call.1']
    #allocation5 [shape = 'u8[98304]{0}', space=vmem, size = 0x18000, scoped, tag = 'input window, operand 1, single buffered']
    #allocation6 [shape = 's32[1]{0}', space=sflag, size = 0x4, scoped, tag = 'scoped memory for tpu_custom_call.1']
    #allocation7 [shape = 'u8[172032]{0}', space=vmem, size = 0x2a000, scoped, tag = 'input window, operand 3, single buffered']
    #allocation8 [shape = 'u8[16384]{0}', space=vmem, size = 0x4000, scoped, tag = 'output window, operand 0, single buffered']
    %10 = vsyncpa [#allocation3], 0
    %11 = vsyncpa [#allocation6], 0
    %12 = vsyncpa [#allocation4], 0
    // Predicated region
    $region2: #{tpu_custom_call.1} parent=1 // pred_check
      _
    $region3: #{tpu_custom_call.1} parent=1 // pred_check_branch
      %14 = sbr.rel (0) target = $region5
    $region4: #{tpu_custom_call.1} parent=1 // pred_region
      %16 = vsyncadd [#allocation3], 0
      %s17 = sshll.u32 %s0, 4
      %s18 = int_to_ptr.hbm [resolvable:$true] %s17
      %s19 = sshll.u32 [#allocation2], 4
      %s20 = int_to_ptr.vmem [resolvable:$true] %s19
      %25 = dma.hbm_to_vmem [thread:$0]  %s18, 512, %s20, [#allocation3], 128, 128, 8
    $region5: #{tpu_custom_call.1} parent=1 // pred_fallthru
      _
    // Predicated region
    $region6: #{tpu_custom_call.1} parent=1 // pred_check
      _
    $region7: #{tpu_custom_call.1} parent=1 // pred_check_branch
      %27 = sbr.rel (0) target = $region9
    $region8: #{tpu_custom_call.1} parent=1 // pred_region
      %29 = vsyncadd [#allocation6], 0
      %s30 = sshll.u32 %s1, 4
      %s31 = int_to_ptr.hbm [resolvable:$true] %s30
      %s32 = sshll.u32 [#allocation5], 4
      %s33 = int_to_ptr.vmem [resolvable:$true] %s32
      %38 = dma.hbm_to_vmem [thread:$0]  %s31, 3072, %s33, [#allocation6], 128, 128, 8
    $region9: #{tpu_custom_call.1} parent=1 // pred_fallthru
      _
    // Predicated region
    $region10: #{tpu_custom_call.1} parent=1 // pred_check
      _
    $region11: #{tpu_custom_call.1} parent=1 // pred_check_branch
      %40 = sbr.rel (0) target = $region13
    $region12: #{tpu_custom_call.1} parent=1 // pred_region
      _
    $region13: #{tpu_custom_call.1} parent=1 // pred_fallthru
      _
    // Predicated region
    $region14: #{tpu_custom_call.1} parent=1 // pred_check
      _
    $region15: #{tpu_custom_call.1} parent=1 // pred_check_branch
      %42 = sbr.rel (0) target = $region17
    $region16: #{tpu_custom_call.1} parent=1 // pred_region
      %44 = vsyncadd [#allocation6], 0
      %s45 = sshll.u32 %s3, 4
      %s46 = int_to_ptr.hbm [resolvable:$true] %s45
      %s47 = sshll.u32 [#allocation7], 4
      %s48 = int_to_ptr.vmem [resolvable:$true] %s47
      %53 = dma.hbm_to_vmem [thread:$0]  %s46, 5376, %s48, [#allocation6], 128, 128, 8
    $region17: #{tpu_custom_call.1} parent=1 // pred_fallthru
      _
    // Predicated region
    $region18: #{tpu_custom_call.1} parent=1 // pred_check
      _
    $region19: #{tpu_custom_call.1} parent=1 // pred_check_branch
      %55 = sbr.rel (0) target = $region21
    $region20: #{tpu_custom_call.1} parent=1 // pred_region
      _
    $region21: #{tpu_custom_call.1} parent=1 // pred_fallthru
      _
    // Predicated region
    $region22: #{tpu_custom_call.1} parent=1 // pred_check
      _
    $region23: #{tpu_custom_call.1} parent=1 // pred_check_branch
      %57 = sbr.rel (0) target = $region25
    $region24: #{tpu_custom_call.1} parent=1 // pred_region
      %59 = dma.done [#allocation3], 512
    $region25: #{tpu_custom_call.1} parent=1 // pred_fallthru
      _
    // Predicated region
    $region26: #{tpu_custom_call.1} parent=1 // pred_check
      _
    $region27: #{tpu_custom_call.1} parent=1 // pred_check_branch
      %61 = sbr.rel (0) target = $region29
    $region28: #{tpu_custom_call.1} parent=1 // pred_region
      %63 = dma.done [#allocation6], 3072
    $region29: #{tpu_custom_call.1} parent=1 // pred_fallthru
      _
    // Predicated region
    $region30: #{tpu_custom_call.1} parent=1 // pred_check
      _
    $region31: #{tpu_custom_call.1} parent=1 // pred_check_branch
      %65 = sbr.rel (0) target = $region33
    $region32: #{tpu_custom_call.1} parent=1 // pred_region
      %67 = dma.done [#allocation6], 5376
    $region33: #{tpu_custom_call.1} parent=1 // pred_fallthru
      _
    %v68 = vld [vmem:[%s2] sm:$0x1]
    %v69 = vld [vmem:[%s4] sm:$0x1]
    %v70 = vld [vmem:[#allocation2] sm:$0xff]
    %v71 = vld [vmem:[#allocation2 + $0x8] sm:$0xff]
    %v72 = vld [vmem:[#allocation2 + $0x10] sm:$0xff]
    %v73 = vld [vmem:[#allocation2 + $0x18] sm:$0x3f]
    %v74 = vld [vmem:[#allocation5] sm:$0xff]
    %v75 = vld [vmem:[#allocation5 + $0x8] sm:$0xff]
    %v76 = vld [vmem:[#allocation5 + $0x10] sm:$0xff]
    %v77 = vld [vmem:[#allocation5 + $0x18] sm:$0xff]
    %v78 = vld [vmem:[#allocation5 + $0x20] sm:$0xff]
    %v79 = vld [vmem:[#allocation5 + $0x28] sm:$0xff]
    %v80 = vld [vmem:[#allocation5 + $0x30] sm:$0xff]
    %v81 = vld [vmem:[#allocation5 + $0x38] sm:$0xff]
    %v82 = vld [vmem:[#allocation2 + $0x1] sm:$0xff]
    %v83 = vld [vmem:[#allocation2 + $0x9] sm:$0xff]
    %v84 = vld [vmem:[#allocation2 + $0x11] sm:$0xff]
    %v85 = vld [vmem:[#allocation2 + $0x19] sm:$0x3f]
    %s86 = scalar_lea.vmem [#allocation5], 64
    %v87 = vld [vmem:[%s86] sm:$0xff]
    %v88 = vld [vmem:[%s86 + $0x8] sm:$0xff]
    %v89 = vld [vmem:[%s86 + $0x10] sm:$0xff]
    %v90 = vld [vmem:[%s86 + $0x18] sm:$0xff]
    %v91 = vld [vmem:[%s86 + $0x20] sm:$0xff]
    %v92 = vld [vmem:[%s86 + $0x28] sm:$0xff]
    %v93 = vld [vmem:[%s86 + $0x30] sm:$0xff]
    %v94 = vld [vmem:[%s86 + $0x38] sm:$0xff]
    %vm95 = vcmask 523264
    %v97 = vsel %vm95, %v82, 0
    %v100 = vsel %vm95, %v83, 0
    %v103 = vsel %vm95, %v84, 0
    %v106 = vsel %vm95, %v85, 0
    %108 = vmatpush.msra.mxu0 0.0
    %109 = vmatpush.msra.mxu0 0.0
    %110 = vmatpush.msra.mxu0 0.0
    %111 = vmatpush.msra.mxu0 0.0
    %112 = vmatpush.msra.mxu0 0.0
    %113 = vmatpush.msra.mxu0 0.0
    %114 = vmatpush.msra.mxu0 0.0
    %115 = vmatpush.msra.mxu0 0.0
    %116 = vmatpush.msra.mxu0 %v94
    %117 = vmatpush.msra.mxu0 %v93
    %118 = vmatpush.msra.mxu0 %v92
    %119 = vmatpush.msra.mxu0 %v91
    %120 = vmatpush.msra.mxu0 %v90
    %121 = vmatpush.msra.mxu0 %v89
    %122 = vmatpush.msra.mxu0 %v88
    %123 = vmatpush.msra.mxu0 %v87
    %124 = vmatmul.f32.gmra.mxu0 %v97
    %v125 = vpop.f32.mrf.mxu0
    %v126 = vadd.f32 0.0, %v125
    %127 = vmatmul.f32.gmra.mxu0 %v100
    %v128 = vpop.f32.mrf.mxu0
    %v129 = vadd.f32 0.0, %v128
    %130 = vmatmul.f32.gmra.mxu0 %v103
    %v131 = vpop.f32.mrf.mxu0
    %v132 = vadd.f32 0.0, %v131
    %133 = vmatmul.f32.gmra.mxu0 %v106
    %v134 = vpop.f32.mrf.mxu0
    %v135 = vadd.f32 0.0, %v134
    %136 = vdwg.mxu0
    %v138 = vsel %vm95, %v70, 0
    %v141 = vsel %vm95, %v71, 0
    %v144 = vsel %vm95, %v72, 0
    %v147 = vsel %vm95, %v73, 0
    %149 = vmatpush.msra.mxu0 0.0
    %150 = vmatpush.msra.mxu0 0.0
    %151 = vmatpush.msra.mxu0 0.0
    %152 = vmatpush.msra.mxu0 0.0
    %153 = vmatpush.msra.mxu0 0.0
    %154 = vmatpush.msra.mxu0 0.0
    %155 = vmatpush.msra.mxu0 0.0
    %156 = vmatpush.msra.mxu0 0.0
    %157 = vmatpush.msra.mxu0 %v81
    %158 = vmatpush.msra.mxu0 %v80
    %159 = vmatpush.msra.mxu0 %v79
    %160 = vmatpush.msra.mxu0 %v78
    %161 = vmatpush.msra.mxu0 %v77
    %162 = vmatpush.msra.mxu0 %v76
    %163 = vmatpush.msra.mxu0 %v75
    %164 = vmatpush.msra.mxu0 %v74
    %165 = vmatmul.f32.gmra.mxu0 %v138
    %v166 = vpop.f32.mrf.mxu0
    %v167 = vadd.f32 %v126, %v166
    %168 = vmatmul.f32.gmra.mxu0 %v141
    %v169 = vpop.f32.mrf.mxu0
    %v170 = vadd.f32 %v129, %v169
    %171 = vmatmul.f32.gmra.mxu0 %v144
    %v172 = vpop.f32.mrf.mxu0
    %v173 = vadd.f32 %v132, %v172
    %174 = vmatmul.f32.gmra.mxu0 %v147
    %v175 = vpop.f32.mrf.mxu0
    %v176 = vadd.f32 %v135, %v175
    %177 = vdwg.mxu0
    %v178 = vld [vmem:[#allocation2 + $0x2] sm:$0xff]
    %v179 = vld [vmem:[#allocation2 + $0xa] sm:$0xff]
    %v180 = vld [vmem:[#allocation2 + $0x12] sm:$0xff]
    %v181 = vld [vmem:[#allocation2 + $0x1a] sm:$0x3f]
    %s182 = scalar_lea.vmem [#allocation5], 128
    %v183 = vld [vmem:[%s182] sm:$0xff]
    %v184 = vld [vmem:[%s182 + $0x8] sm:$0xff]
    %v185 = vld [vmem:[%s182 + $0x10] sm:$0xff]
    %v186 = vld [vmem:[%s182 + $0x18] sm:$0xff]
    %v187 = vld [vmem:[%s182 + $0x20] sm:$0xff]
    %v188 = vld [vmem:[%s182 + $0x28] sm:$0xff]
    %v189 = vld [vmem:[%s182 + $0x30] sm:$0xff]
    %v190 = vld [vmem:[%s182 + $0x38] sm:$0xff]
    %v192 = vsel %vm95, %v178, 0
    %v195 = vsel %vm95, %v179, 0
    %v198 = vsel %vm95, %v180, 0
    %v201 = vsel %vm95, %v181, 0
    %203 = vmatpush.msra.mxu0 0.0
    %204 = vmatpush.msra.mxu0 0.0
    %205 = vmatpush.msra.mxu0 0.0
    %206 = vmatpush.msra.mxu0 0.0
    %207 = vmatpush.msra.mxu0 0.0
    %208 = vmatpush.msra.mxu0 0.0
    %209 = vmatpush.msra.mxu0 0.0
    %210 = vmatpush.msra.mxu0 0.0
    %211 = vmatpush.msra.mxu0 %v190
    %212 = vmatpush.msra.mxu0 %v189
    %213 = vmatpush.msra.mxu0 %v188
    %214 = vmatpush.msra.mxu0 %v187
    %215 = vmatpush.msra.mxu0 %v186
    %216 = vmatpush.msra.mxu0 %v185
    %217 = vmatpush.msra.mxu0 %v184
    %218 = vmatpush.msra.mxu0 %v183
    %219 = vmatmul.f32.gmra.mxu0 %v192
    %v220 = vpop.f32.mrf.mxu0
    %v221 = vadd.f32 0.0, %v220
    %222 = vmatmul.f32.gmra.mxu0 %v195
    %v223 = vpop.f32.mrf.mxu0
    %v224 = vadd.f32 0.0, %v223
    %225 = vmatmul.f32.gmra.mxu0 %v198
    %v226 = vpop.f32.mrf.mxu0
    %v227 = vadd.f32 0.0, %v226
    %228 = vmatmul.f32.gmra.mxu0 %v201
    %v229 = vpop.f32.mrf.mxu0
    %v230 = vadd.f32 0.0, %v229
    %231 = vdwg.mxu0
    %v232 = vadd.f32 %v167, %v221
    %v233 = vadd.f32 %v170, %v224
    %v234 = vadd.f32 %v173, %v227
    %v235 = vadd.f32 %v176, %v230
    %v237 = vperm.slane %v68, 0
    %v239 = vadd.f32 %v232, %v237
    %v240 = vadd.f32 %v233, %v237
    %v241 = vadd.f32 %v234, %v237
    %v242 = vadd.f32 %v235, %v237
    %v243 = vmax.f32 %v239, 0.0
    %v244 = vmax.f32 %v240, 0.0
    %v245 = vmax.f32 %v241, 0.0
    %v246 = vmax.f32 %v242, 0.0
    %v247 = vld [vmem:[#allocation7] sm:$0xff]
    %v248 = vld [vmem:[#allocation7 + $0x8] sm:$0xff]
    %v249 = vld [vmem:[#allocation7 + $0x10] sm:$0xff]
    %v250 = vld [vmem:[#allocation7 + $0x18] sm:$0xff]
    %v251 = vld [vmem:[#allocation7 + $0x20] sm:$0xff]
    %v252 = vld [vmem:[#allocation7 + $0x28] sm:$0xff]
    %v253 = vld [vmem:[#allocation7 + $0x30] sm:$0xff]
    %v254 = vld [vmem:[#allocation7 + $0x38] sm:$0xff]
    %v255 = vld [vmem:[#allocation7 + $0x40] sm:$0xff]
    %v256 = vld [vmem:[#allocation7 + $0x48] sm:$0xff]
    %v257 = vld [vmem:[#allocation7 + $0x50] sm:$0xff]
    %v258 = vld [vmem:[#allocation7 + $0x58] sm:$0xff]
    %v259 = vld [vmem:[#allocation7 + $0x60] sm:$0xff]
    %v260 = vld [vmem:[#allocation7 + $0x68] sm:$0xff]
    %s261 = scalar_lea.vmem [#allocation7], 112
    %v262 = vld [vmem:[%s261] sm:$0xff]
    %v263 = vld [vmem:[%s261 + $0x8] sm:$0xff]
    %v264 = vld [vmem:[%s261 + $0x10] sm:$0xff]
    %v265 = vld [vmem:[%s261 + $0x18] sm:$0xff]
    %v266 = vld [vmem:[%s261 + $0x20] sm:$0xff]
    %v267 = vld [vmem:[%s261 + $0x28] sm:$0xff]
    %v268 = vld [vmem:[%s261 + $0x30] sm:$0xff]
    %v269 = vld [vmem:[%s261 + $0x38] sm:$0xff]
    %v270 = vld [vmem:[%s261 + $0x40] sm:$0xff]
    %v271 = vld [vmem:[%s261 + $0x48] sm:$0xff]
    %v272 = vld [vmem:[%s261 + $0x50] sm:$0xff]
    %v273 = vld [vmem:[%s261 + $0x58] sm:$0xff]
    %v274 = vld [vmem:[%s261 + $0x60] sm:$0xff]
    %v275 = vld [vmem:[%s261 + $0x68] sm:$0xff]
    %vm280 = vcmask 1046528
    %v281 = vrot.slane %v243, 1
    %v282 = vrot.slane %v244, 1
    %v283 = vsel %vm280, %v281, %v282
    %v284 = vrot.slane %v245, 1
    %v285 = vsel %vm280, %v282, %v284
    %v286 = vrot.slane %v246, 1
    %v287 = vsel %vm280, %v284, %v286
    %vm288 = vcmask 916480
    %v289 = vsel %vm288, %v283, 0
    %v291 = vsel %vm288, %v285, 0
    %v293 = vsel %vm288, %v287, 0
    %v295 = vsel %vm288, %v286, 0
    %297 = vmatpush.msra.mxu0 0.0
    %298 = vmatpush.msra.mxu0 0.0
    %299 = vmatpush.msra.mxu0 %v275
    %300 = vmatpush.msra.mxu0 %v274
    %301 = vmatpush.msra.mxu0 %v273
    %302 = vmatpush.msra.mxu0 %v272
    %303 = vmatpush.msra.mxu0 %v271
    %304 = vmatpush.msra.mxu0 %v270
    %305 = vmatpush.msra.mxu0 %v269
    %306 = vmatpush.msra.mxu0 %v268
    %307 = vmatpush.msra.mxu0 %v267
    %308 = vmatpush.msra.mxu0 %v266
    %309 = vmatpush.msra.mxu0 %v265
    %310 = vmatpush.msra.mxu0 %v264
    %311 = vmatpush.msra.mxu0 %v263
    %312 = vmatpush.msra.mxu0 %v262
    %313 = vmatmul.f32.gmra.mxu0 %v289
    %v314 = vpop.f32.mrf.mxu0
    %v315 = vadd.f32 0.0, %v314
    %316 = vmatmul.f32.gmra.mxu0 %v291
    %v317 = vpop.f32.mrf.mxu0
    %v318 = vadd.f32 0.0, %v317
    %319 = vmatmul.f32.gmra.mxu0 %v293
    %v320 = vpop.f32.mrf.mxu0
    %v321 = vadd.f32 0.0, %v320
    %322 = vmatmul.f32.gmra.mxu0 %v295
    %v323 = vpop.f32.mrf.mxu0
    %v324 = vadd.f32 0.0, %v323
    %325 = vdwg.mxu0
    %v326 = vsel %vm288, %v243, 0
    %v328 = vsel %vm288, %v244, 0
    %v330 = vsel %vm288, %v245, 0
    %v332 = vsel %vm288, %v246, 0
    %334 = vmatpush.msra.mxu0 0.0
    %335 = vmatpush.msra.mxu0 0.0
    %336 = vmatpush.msra.mxu0 %v260
    %337 = vmatpush.msra.mxu0 %v259
    %338 = vmatpush.msra.mxu0 %v258
    %339 = vmatpush.msra.mxu0 %v257
    %340 = vmatpush.msra.mxu0 %v256
    %341 = vmatpush.msra.mxu0 %v255
    %342 = vmatpush.msra.mxu0 %v254
    %343 = vmatpush.msra.mxu0 %v253
    %344 = vmatpush.msra.mxu0 %v252
    %345 = vmatpush.msra.mxu0 %v251
    %346 = vmatpush.msra.mxu0 %v250
    %347 = vmatpush.msra.mxu0 %v249
    %348 = vmatpush.msra.mxu0 %v248
    %349 = vmatpush.msra.mxu0 %v247
    %350 = vmatmul.f32.gmra.mxu0 %v326
    %v351 = vpop.f32.mrf.mxu0
    %v352 = vadd.f32 %v315, %v351
    %353 = vmatmul.f32.gmra.mxu0 %v328
    %v354 = vpop.f32.mrf.mxu0
    %v355 = vadd.f32 %v318, %v354
    %356 = vmatmul.f32.gmra.mxu0 %v330
    %v357 = vpop.f32.mrf.mxu0
    %v358 = vadd.f32 %v321, %v357
    %359 = vmatmul.f32.gmra.mxu0 %v332
    %v360 = vpop.f32.mrf.mxu0
    %v361 = vadd.f32 %v324, %v360
    %362 = vdwg.mxu0
    %s363 = scalar_lea.vmem [#allocation7], 224
    %v364 = vld [vmem:[%s363] sm:$0xff]
    %v365 = vld [vmem:[%s363 + $0x8] sm:$0xff]
    %v366 = vld [vmem:[%s363 + $0x10] sm:$0xff]
    %v367 = vld [vmem:[%s363 + $0x18] sm:$0xff]
    %v368 = vld [vmem:[%s363 + $0x20] sm:$0xff]
    %v369 = vld [vmem:[%s363 + $0x28] sm:$0xff]
    %v370 = vld [vmem:[%s363 + $0x30] sm:$0xff]
    %v371 = vld [vmem:[%s363 + $0x38] sm:$0xff]
    %v372 = vld [vmem:[%s363 + $0x40] sm:$0xff]
    %v373 = vld [vmem:[%s363 + $0x48] sm:$0xff]
    %v374 = vld [vmem:[%s363 + $0x50] sm:$0xff]
    %v375 = vld [vmem:[%s363 + $0x58] sm:$0xff]
    %v376 = vld [vmem:[%s363 + $0x60] sm:$0xff]
    %v377 = vld [vmem:[%s363 + $0x68] sm:$0xff]
    %vm378 = vcmask 1045504
    %v379 = vrot.slane %v243, 2
    %v380 = vrot.slane %v244, 2
    %v381 = vsel %vm378, %v379, %v380
    %v382 = vrot.slane %v245, 2
    %v383 = vsel %vm378, %v380, %v382
    %v384 = vrot.slane %v246, 2
    %v385 = vsel %vm378, %v382, %v384
    %v386 = vsel %vm288, %v381, 0
    %v388 = vsel %vm288, %v383, 0
    %v390 = vsel %vm288, %v385, 0
    %v392 = vsel %vm288, %v384, 0
    %394 = vmatpush.msra.mxu0 0.0
    %395 = vmatpush.msra.mxu0 0.0
    %396 = vmatpush.msra.mxu0 %v377
    %397 = vmatpush.msra.mxu0 %v376
    %398 = vmatpush.msra.mxu0 %v375
    %399 = vmatpush.msra.mxu0 %v374
    %400 = vmatpush.msra.mxu0 %v373
    %401 = vmatpush.msra.mxu0 %v372
    %402 = vmatpush.msra.mxu0 %v371
    %403 = vmatpush.msra.mxu0 %v370
    %404 = vmatpush.msra.mxu0 %v369
    %405 = vmatpush.msra.mxu0 %v368
    %406 = vmatpush.msra.mxu0 %v367
    %407 = vmatpush.msra.mxu0 %v366
    %408 = vmatpush.msra.mxu0 %v365
    %409 = vmatpush.msra.mxu0 %v364
    %410 = vmatmul.f32.gmra.mxu0 %v386
    %v411 = vpop.f32.mrf.mxu0
    %v412 = vadd.f32 0.0, %v411
    %413 = vmatmul.f32.gmra.mxu0 %v388
    %v414 = vpop.f32.mrf.mxu0
    %v415 = vadd.f32 0.0, %v414
    %416 = vmatmul.f32.gmra.mxu0 %v390
    %v417 = vpop.f32.mrf.mxu0
    %v418 = vadd.f32 0.0, %v417
    %419 = vmatmul.f32.gmra.mxu0 %v392
    %v420 = vpop.f32.mrf.mxu0
    %v421 = vadd.f32 0.0, %v420
    %422 = vdwg.mxu0
    %v423 = vadd.f32 %v352, %v412
    %v424 = vadd.f32 %v355, %v415
    %v425 = vadd.f32 %v358, %v418
    %v426 = vadd.f32 %v361, %v421
    %v428 = vperm.slane %v69, 0
    %v430 = vadd.f32 %v423, %v428
    %v431 = vadd.f32 %v424, %v428
    %v432 = vadd.f32 %v425, %v428
    %v433 = vadd.f32 %v426, %v428
    %434 = vst [vmem:[#allocation8] sm:$0xff] %v430
    %435 = vst [vmem:[#allocation8 + $0x8] sm:$0xff] %v431
    %436 = vst [vmem:[#allocation8 + $0x10] sm:$0xff] %v432
    %437 = vst [vmem:[#allocation8 + $0x18] sm:$0xf] %v433
    %438 = vst [vmem:[#allocation8 + $0x1c] sm:$0xf] 0.0
    // Predicated region
    $region34: #{tpu_custom_call.1} parent=1 // pred_check
      _
    $region35: #{tpu_custom_call.1} parent=1 // pred_check_branch
      %440 = sbr.rel (0) target = $region37
    $region36: #{tpu_custom_call.1} parent=1 // pred_region
      %442 = vsyncadd [#allocation4], 0
      %s443 = sshll.u32 [#allocation8], 4
      %s444 = int_to_ptr.vmem [resolvable:$true] %s443
      %s445 = sshll.u32 %s5, 4
      %s446 = int_to_ptr.hbm [resolvable:$true] %s445
      %451 = dma.vmem_to_hbm [thread:$0]  %s444, 512, %s446, [#allocation4], 128, 128, 8
    $region37: #{tpu_custom_call.1} parent=1 // pred_fallthru
      _
    // Predicated region
    $region38: #{tpu_custom_call.1} parent=1 // pred_check
      _
    $region39: #{tpu_custom_call.1} parent=1 // pred_check_branch
      %453 = sbr.rel (0) target = $region41
    $region40: #{tpu_custom_call.1} parent=1 // pred_region
      %455 = dma.done [#allocation4], 512
    $region41: #{tpu_custom_call.1} parent=1 // pred_fallthru
      _
    %456 = vsyncpa [#allocation3], 1
    %457 = vsyncpa [#allocation6], 1
    %458 = vsyncpa [#allocation4], 1

</llo_original>
